<compile_context>
chip_gen: v6e
topology: v6e:2x2x1
jax: 0.10.0
libtpu: 0.0.40
codegen_flags: <defaults>
</compile_context>

<pallas_src>
import math
import functools

import jax
import jax.numpy as jnp
from jax.experimental import pallas as pl
from jax.experimental.pallas import tpu as pltpu


_VMEM_ROW_BUDGET = 40 * 1024 * 1024   # sizing budget: leaves headroom on v7x (64 MiB physical)
_VMEM_LIMIT_BYTES = 48 * 1024 * 1024  # > 32 MiB scoped default, < v7x physical VMEM


# ----------------------------------------------------------------------------
# Pallas kernel: fused QKV + per-head exp-softmax attention + additive pooling
# ----------------------------------------------------------------------------
def _text_encoder_kernel(x_ref, wqkv_ref, bqkv_ref, w1_ref, b1_ref, w2_ref,
                         b2_ref, out_ref, *, n_heads, head_w, batch_tile,
                         seq_len):
    Bt, S = batch_tile, seq_len
    D = x_ref.shape[-1]
    sec = n_heads * head_w                       # width of each Q / K / V section

    xf = x_ref[...].reshape(Bt * S, D)           # (Bt*S, D), bf16

    # Single fused, pre-transposed, lane-padded QKV projection (scale folded in).
    # bf16 x bf16 -> f32 accumulation on the MXU.
    qkv = jnp.dot(xf, wqkv_ref[...],
                  preferred_element_type=jnp.float32) + bqkv_ref[...]

    # Per-head attention; every slice is a 128-lane-aligned block.
    # V weights were placed at lane offset h*d_v inside each head's slab and the
    # remaining lanes are exactly zero, so summing the per-head contexts yields
    # ONE packed 128-lane context slab (no concat, no roll).
    ctx_p = None
    for h in range(n_heads):                     # static unroll (small n_heads)
        o = h * head_w
        qh = qkv[:, o:o + head_w].reshape(Bt, S, head_w)
        kh = qkv[:, sec + o:sec + o + head_w].reshape(Bt, S, head_w)
        vh = qkv[:, 2 * sec + o:2 * sec + o + head_w].reshape(Bt, S, head_w)

        s = jnp.exp(jnp.einsum('bqd,bkd->bqk', qh, kh,
                               preferred_element_type=jnp.float32))
        attn = s * pl.reciprocal(jnp.sum(s, axis=-1, keepdims=True) + 1e-8,
                                 approx=True)
        ctx_h = jnp.einsum('bqk,bkd->bqd', attn, vh,
                           preferred_element_type=jnp.float32)
        ctx_p = ctx_h if ctx_p is None else ctx_p + ctx_h
    # ctx_p: (Bt, S, head_w); head h's real d_v context columns live at lanes
    # [h*d_v, (h+1)*d_v), everything else is exactly 0.

    # Additive-attention pooling (W1/W2 pre-transposed, zero-padded, bf16).
    ctx2 = ctx_p.reshape(Bt * S, head_w)
    e = jnp.tanh(jnp.dot(ctx2.astype(jnp.bfloat16), w1_ref[...],
                         preferred_element_type=jnp.float32) + b1_ref[...])
    logit = jnp.dot(e.astype(jnp.bfloat16), w2_ref[...],
                    preferred_element_type=jnp.float32) + b2_ref[...]
    alpha = jnp.exp(logit).reshape(Bt, S, 1)     # exp-softmax (no max-sub), as in PyTorch ref
    alpha = alpha * pl.reciprocal(jnp.sum(alpha, axis=1, keepdims=True) + 1e-8,
                                  approx=True)

    # Single lane-dense (Bt, 128) store (real 2*d_v columns extracted in wrapper).
    out_ref[...] = jnp.sum(ctx_p * alpha, axis=1)


# ----------------------------------------------------------------------------
# One-time weight preparation (hoist out of the per-call path and cache this!)
# ----------------------------------------------------------------------------
def prepare_text_encoder_params(params, *, n_heads, d_k, d_v, query_dim,
                                head_w=128):
    """Fuse + pre-transpose + lane-pad + bf16-cast the weights (exact zero pad)."""
    D = params["wq"].shape[1]
    assert d_k <= head_w and d_v <= head_w
    assert n_heads * d_v <= head_w, "packed context must fit one 128-lane slab"
    inv_scale = 1.0 / math.sqrt(d_k)             # folded into Q weights & bias
    hp = pl.cdiv(query_dim, 128) * 128           # lane-padded hidden size

    def head_block(w_rows, dh, col_off, scale):
        # w_rows: (dh, D) rows of a PyTorch Linear weight -> (D, head_w) block.
        blk = jnp.zeros((D, head_w), jnp.float32)
        return blk.at[:, col_off:col_off + dh].set(scale * w_rows.T)

    def head_bias(b_row, dh, col_off, scale):
        blk = jnp.zeros((1, head_w), jnp.float32)
        return blk.at[:, col_off:col_off + dh].set(scale * b_row.reshape(1, dh))

    wq = params["wq"].reshape(n_heads, d_k, D)
    wk = params["wk"].reshape(n_heads, d_k, D)
    wv = params["wv"].reshape(n_heads, d_v, D)
    bq = params["bq"].reshape(n_heads, d_k)
    bk = params["bk"].reshape(n_heads, d_k)
    bv = params["bv"].reshape(n_heads, d_v)

    # Q/K real columns at lane offset 0; V head h's real columns at offset h*d_v
    # so per-head contexts sum straight into one packed 128-lane slab.
    w_blocks = ([head_block(wq[h], d_k, 0, inv_scale) for h in range(n_heads)]
                + [head_block(wk[h], d_k, 0, 1.0) for h in range(n_heads)]
                + [head_block(wv[h], d_v, h * d_v, 1.0) for h in range(n_heads)])
    b_blocks = ([head_bias(bq[h], d_k, 0, inv_scale) for h in range(n_heads)]
                + [head_bias(bk[h], d_k, 0, 1.0) for h in range(n_heads)]
                + [head_bias(bv[h], d_v, h * d_v, 1.0) for h in range(n_heads)])

    wqkv = jnp.concatenate(w_blocks, axis=1).astype(jnp.bfloat16)  # (D, 3*H*head_w)
    bqkv = jnp.concatenate(b_blocks, axis=1)                       # f32 (1, 3*H*head_w)

    dh_total = n_heads * d_v
    w1p = jnp.pad(params["w1"].T, ((0, head_w - dh_total),
                                   (0, hp - query_dim))).astype(jnp.bfloat16)
    b1p = jnp.pad(params["b1"], ((0, 0), (0, hp - query_dim)))     # f32 (1, hp)
    w2p = jnp.pad(params["w2"].T, ((0, hp - query_dim), (0, 0))).astype(jnp.bfloat16)

    return dict(wqkv=wqkv, bqkv=bqkv, w1=w1p, b1=b1p, w2=w2p,
                b2=params["b2"].astype(jnp.float32),
                meta=dict(n_heads=n_heads, d_k=d_k, d_v=d_v, head_w=head_w,
                          hp=hp, d_model=D))


# ----------------------------------------------------------------------------
# batch_tile selection: VMEM-budgeted, MXU-filling, megacore-aware
# ----------------------------------------------------------------------------
def _pick_batch_tile(B, S, D, sec, hp, head_w):
    # Per-batch-row VMEM for one grid step (+50% layout/pipeline slack).
    per_row = int(1.5 * (2 * 2 * S * D          # bf16 x block, double-buffered
                         + 2 * 4 * head_w       # f32 out block, double-buffered
                         + 4 * S * 3 * sec      # qkv intermediate (f32)
                         + 4 * S * head_w       # packed ctx (f32)
                         + 4 * S * hp))         # additive-attention hidden (f32)
    # Resident weights/biases, double-buffered by the default pipeline.
    weights = 2 * (2 * D * 3 * sec + 4 * 3 * sec + 2 * head_w * hp
                   + 4 * hp + 2 * hp + 4)
    max_rows = max(1, (_VMEM_ROW_BUDGET - weights) // per_row)

    # Output block second-minor dim must satisfy the (8,128) rule:
    # batch_tile == B or batch_tile % 8 == 0.
    valid = [d for d in range(1, B + 1)
             if B % d == 0 and (d == B or d % 8 == 0)]
    fitting = [d for d in valid if d <= max_rows] or [min(valid)]

    target = max(1, pl.cdiv(256, S))            # Bt*S >= 256 fills an MXU pass
    # Prefer the largest tile that still leaves >= 2 parallel blocks (feeds both
    # v7x TensorCores); otherwise take the largest fitting tile (single grid
    # step -> minimal per-step overhead on single-TC v5e/v6e).
    two_blocks = [d for d in fitting if d >= target and B // d >= 2]
    return max(two_blocks) if two_blocks else max(fitting)


# ----------------------------------------------------------------------------
# Kernel launcher
# ----------------------------------------------------------------------------
def text_encoder_pallas(text_vector, prep, *, batch_tile=None):
    """text_vector: (B, S, D) float32 -> (B, n_heads*d_v) float32."""
    meta = prep["meta"]
    n_heads, d_v = meta["n_heads"], meta["d_v"]
    head_w, hp = meta["head_w"], meta["hp"]
    B, S, D = text_vector.shape
    assert D == meta["d_model"]
    sec = n_heads * head_w

    if batch_tile is None:
        batch_tile = _pick_batch_tile(B, S, D, sec, hp, head_w)
    assert B % batch_tile == 0
    assert batch_tile == B or batch_tile % 8 == 0

    x_bf16 = text_vector.astype(jnp.bfloat16)    # halves x DMA; MXU is bf16-native

    def resident(shape):
        return pl.BlockSpec(shape, lambda i, _n=len(shape): (0,) * _n)

    kernel = functools.partial(_text_encoder_kernel, n_heads=n_heads,
                               head_w=head_w, batch_tile=batch_tile, seq_len=S)

    out_packed = pl.pallas_call(
        kernel,
        out_shape=jax.ShapeDtypeStruct((B, head_w), jnp.float32),
        grid=(B // batch_tile,),
        in_specs=[
            pl.BlockSpec((batch_tile, S, D), lambda i: (i, 0, 0)),   # x (per batch tile)
            resident((D, 3 * sec)),                                  # fused W_QKV (bf16)
            resident((1, 3 * sec)),                                  # fused b_QKV (f32)
            resident((head_w, hp)),                                  # att_fc1 weight (bf16)
            resident((1, hp)),                                       # att_fc1 bias (f32)
            resident((hp, 1)),                                       # att_fc2 weight (bf16)
            resident((1, 1)),                                        # att_fc2 bias (f32)
        ],
        out_specs=pl.BlockSpec((batch_tile, head_w), lambda i: (i, 0)),
        compiler_params=pltpu.CompilerParams(
            dimension_semantics=("parallel",),
            vmem_limit_bytes=_VMEM_LIMIT_BYTES),
    )(x_bf16, prep["wqkv"], prep["bqkv"], prep["w1"], prep["b1"],
      prep["w2"], prep["b2"])

    # Real per-head d_v columns are packed contiguously in the first H*d_v lanes.
    return out_packed[:, :n_heads * d_v]


# ----------------------------------------------------------------------------
# Pure-JAX reference (mirrors the PyTorch forward exactly, inference mode, f32)
# ----------------------------------------------------------------------------
def text_encoder_reference(text_vector, params, *, n_heads, d_k, d_v):
    q = text_vector @ params["wq"].T + params["bq"]
    k = text_vector @ params["wk"].T + params["bk"]
    v = text_vector @ params["wv"].T + params["bv"]
    B, S, _ = text_vector.shape
    qh = q.reshape(B, S, n_heads, d_k).transpose(0, 2, 1, 3)
    kh = k.reshape(B, S, n_heads, d_k).transpose(0, 2, 1, 3)
    vh = v.reshape(B, S, n_heads, d_v).transpose(0, 2, 1, 3)
    scores = jnp.exp(jnp.einsum("bhqd,bhkd->bhqk", qh, kh) / math.sqrt(d_k))
    attn = scores / (jnp.sum(scores, axis=-1, keepdims=True) + 1e-8)
    ctx = jnp.einsum("bhqk,bhkd->bhqd", attn, vh)
    ctx = ctx.transpose(0, 2, 1, 3).reshape(B, S, n_heads * d_v)
    e = jnp.tanh(ctx @ params["w1"].T + params["b1"])
    alpha = jnp.exp(e @ params["w2"].T + params["b2"])
    alpha = alpha / (jnp.sum(alpha, axis=1, keepdims=True) + 1e-8)
    return jnp.einsum("bsd,bso->bd", ctx, alpha)


# ----------------------------------------------------------------------------
# Deterministic parameter construction
# ----------------------------------------------------------------------------
def _xavier(key, shape):
    fan_out, fan_in = shape
    limit = math.sqrt(6.0 / (fan_in + fan_out))
    return jax.random.uniform(key, shape, jnp.float32, -limit, limit)


def make_params(key, d_model, n_heads, d_k, d_v, query_dim):
    ks = jax.random.split(key, 12)
    return {
        "wq": _xavier(ks[0], (n_heads * d_k, d_model)),
        "bq": 0.01 * jax.random.normal(ks[1], (1, n_heads * d_k), jnp.float32),
        "wk": _xavier(ks[2], (n_heads * d_k, d_model)),
        "bk": 0.01 * jax.random.normal(ks[3], (1, n_heads * d_k), jnp.float32),
        "wv": _xavier(ks[4], (n_heads * d_v, d_model)),
        "bv": 0.01 * jax.random.normal(ks[5], (1, n_heads * d_v), jnp.float32),
        "w1": _xavier(ks[6], (query_dim, n_heads * d_v)),
        "b1": 0.01 * jax.random.normal(ks[7], (1, query_dim), jnp.float32),
        "w2": _xavier(ks[8], (1, query_dim)),
        "b2": 0.01 * jax.random.normal(ks[9], (1, 1), jnp.float32),
    }


# ----------------------------------------------------------------------------
if __name__ == "__main__":
    B = 2                 # batch
    S = 8                 # num_words (the raw `text` has 2*S columns: ids + mask)
    D = 32                # word_embedding_dim (d_model)
    N_HEADS = 2
    D_K = D_V = 20        # fixed by the PyTorch module
    QUERY_DIM = 32
    VOCAB = 50

    key = jax.random.PRNGKey(0)
    k_ids, k_emb, k_par = jax.random.split(key, 3)

    # `text` = concatenation of input_ids and attention_mask along dim 1.
    input_ids = jax.random.randint(k_ids, (B, S), 0, VOCAB)
    attention_mask = jnp.ones((B, S), jnp.int32)
    text = jnp.concatenate([input_ids, attention_mask], axis=1)   # (B, 2*S)

    # Split exactly as in the PyTorch forward.
    ids = text[:, :S]
    _mask = text[:, S:]

    # TODO(synk): the real `encoder_model` (BERT/BART) has no clean Pallas
    # equivalent here; it is replaced by a deterministic embedding lookup.
    embedding_table = 0.1 * jax.random.normal(k_emb, (VOCAB, D), jnp.float32)
    text_vector = embedding_table[ids]            # (B, S, D) == last_hidden_state

    params = make_params(k_par, D, N_HEADS, D_K, D_V, QUERY_DIM)

    # Weight prep is done ONCE (would be cached in a serving path).
    prep = prepare_text_encoder_params(params, n_heads=N_HEADS, d_k=D_K,
                                       d_v=D_V, query_dim=QUERY_DIM)

    out = text_encoder_pallas(text_vector, prep)
    out = jax.block_until_ready(out)

    ref = text_encoder_reference(text_vector, params,
                                 n_heads=N_HEADS, d_k=D_K, d_v=D_V)
    assert out.shape == (B, N_HEADS * D_V)
    # Tolerance covers bf16 matmul inputs + pl.reciprocal(approx=True).
    assert jnp.allclose(out, ref, rtol=3e-2, atol=3e-3), (out, ref)
    print("KERNEL_OK")
</pallas_src>

<mosaic_0001>
module attributes {stable_mosaic.version = 11 : i64} {
  func.func @_text_encoder_kernel(%arg0: i32, %arg1: memref<2x8x32xbf16, #tpu.memory_space<vmem>>, %arg2: memref<32x768xbf16, #tpu.memory_space<vmem>>, %arg3: memref<1x768xf32, #tpu.memory_space<vmem>>, %arg4: memref<128x128xbf16, #tpu.memory_space<vmem>>, %arg5: memref<1x128xf32, #tpu.memory_space<vmem>>, %arg6: memref<128x1xbf16, #tpu.memory_space<vmem>>, %arg7: memref<1x1xf32, #tpu.memory_space<vmem>>, %arg8: memref<2x128xf32, #tpu.memory_space<vmem>>) attributes {dimension_semantics = [#tpu.dimension_semantics<parallel>], iteration_bounds = array<i64: 1>, scalar_prefetch = 0 : i64, scratch_operands = 0 : i64, tpu.core_type = #tpu.core_type<tc>, window_params = [{transform_indices = @transform_0, window_bounds = array<i64: 2, 8, 32>}, {pipeline_mode = #tpu.pipeline_mode<synchronous>, transform_indices = @transform_1, window_bounds = array<i64: 32, 768>}, {pipeline_mode = #tpu.pipeline_mode<synchronous>, transform_indices = @transform_2, window_bounds = array<i64: 1, 768>}, {pipeline_mode = #tpu.pipeline_mode<synchronous>, transform_indices = @transform_3, window_bounds = array<i64: 128, 128>}, {pipeline_mode = #tpu.pipeline_mode<synchronous>, transform_indices = @transform_4, window_bounds = array<i64: 1, 128>}, {pipeline_mode = #tpu.pipeline_mode<synchronous>, transform_indices = @transform_5, window_bounds = array<i64: 128, 1>}, {pipeline_mode = #tpu.pipeline_mode<synchronous>, transform_indices = @transform_6, window_bounds = array<i64: 1, 1>}, {transform_indices = @transform_7, window_bounds = array<i64: 2, 128>}]} {
    %c0 = arith.constant 0 : index
    %c0_0 = arith.constant 0 : index
    %c0_1 = arith.constant 0 : index
    %0 = vector.load %arg1[%c0, %c0_0, %c0_1] : memref<2x8x32xbf16, #tpu.memory_space<vmem>>, vector<2x8x32xbf16>
    %1 = vector.shape_cast %0 : vector<2x8x32xbf16> to vector<16x32xbf16>
    %c0_2 = arith.constant 0 : index
    %c0_3 = arith.constant 0 : index
    %2 = vector.load %arg2[%c0_2, %c0_3] : memref<32x768xbf16, #tpu.memory_space<vmem>>, vector<32x768xbf16>
    %cst = arith.constant dense<0.000000e+00> : vector<16x768xf32>
    %3 = tpu.matmul %1, %2, %cst {dimension_numbers = #tpu.dot_dimension_numbers<[1], [0], [0], [1], [0, 0, 1, 1], [], []>} : vector<16x32xbf16>, vector<32x768xbf16>, vector<16x768xf32> -> vector<16x768xf32>
    %c0_4 = arith.constant 0 : index
    %c0_5 = arith.constant 0 : index
    %4 = vector.load %arg3[%c0_4, %c0_5] : memref<1x768xf32, #tpu.memory_space<vmem>>, vector<1x768xf32>
    %5 = vector.broadcast %4 : vector<1x768xf32> to vector<16x768xf32>
    %6 = arith.addf %3, %5 : vector<16x768xf32>
    %7 = vector.extract_strided_slice %6 {offsets = [0, 0], sizes = [16, 128], strides = [1, 1]} : vector<16x768xf32> to vector<16x128xf32>
    %8 = vector.shape_cast %7 : vector<16x128xf32> to vector<2x8x128xf32>
    %9 = vector.extract_strided_slice %6 {offsets = [0, 256], sizes = [16, 128], strides = [1, 1]} : vector<16x768xf32> to vector<16x128xf32>
    %10 = vector.shape_cast %9 : vector<16x128xf32> to vector<2x8x128xf32>
    %11 = vector.extract_strided_slice %6 {offsets = [0, 512], sizes = [16, 128], strides = [1, 1]} : vector<16x768xf32> to vector<16x128xf32>
    %12 = vector.shape_cast %11 : vector<16x128xf32> to vector<2x8x128xf32>
    "tpu.trace_start"() <{level = 10 : i32, message = "bqd,bkd->bqk"}> : () -> ()
    %cst_6 = arith.constant dense<0.000000e+00> : vector<2x8x8xf32>
    %13 = tpu.matmul %8, %10, %cst_6 {dimension_numbers = #tpu.dot_dimension_numbers<[2], [2], [1], [1], [0, 0, 0, 1, 1, 1], [0], [0]>} : vector<2x8x128xf32>, vector<2x8x128xf32>, vector<2x8x8xf32> -> vector<2x8x8xf32>
    "tpu.trace_stop"() : () -> ()
    %14 = math.exp %13 : vector<2x8x8xf32>
    %cst_7 = arith.constant dense<0.000000e+00> : vector<2x8xf32>
    %15 = vector.multi_reduction <add>, %14, %cst_7 [2] : vector<2x8x8xf32> to vector<2x8xf32>
    %16 = vector.shape_cast %15 : vector<2x8xf32> to vector<2x8x1xf32>
    %cst_8 = arith.constant 9.99999993E-9 : f32
    %17 = vector.broadcast %cst_8 : f32 to vector<2x8x1xf32>
    %18 = arith.addf %16, %17 : vector<2x8x1xf32>
    %19 = tpu.reciprocal %18 {approx = true} : vector<2x8x1xf32> -> vector<2x8x1xf32>
    %20 = vector.broadcast %19 : vector<2x8x1xf32> to vector<2x8x8xf32>
    %21 = arith.mulf %14, %20 : vector<2x8x8xf32>
    "tpu.trace_start"() <{level = 10 : i32, message = "bqk,bkd->bqd"}> : () -> ()
    %cst_9 = arith.constant dense<0.000000e+00> : vector<2x8x128xf32>
    %22 = tpu.matmul %21, %12, %cst_9 {dimension_numbers = #tpu.dot_dimension_numbers<[2], [1], [1], [2], [0, 0, 0, 1, 1, 2], [0], [0]>} : vector<2x8x8xf32>, vector<2x8x128xf32>, vector<2x8x128xf32> -> vector<2x8x128xf32>
    "tpu.trace_stop"() : () -> ()
    %23 = vector.extract_strided_slice %6 {offsets = [0, 128], sizes = [16, 128], strides = [1, 1]} : vector<16x768xf32> to vector<16x128xf32>
    %24 = vector.shape_cast %23 : vector<16x128xf32> to vector<2x8x128xf32>
    %25 = vector.extract_strided_slice %6 {offsets = [0, 384], sizes = [16, 128], strides = [1, 1]} : vector<16x768xf32> to vector<16x128xf32>
    %26 = vector.shape_cast %25 : vector<16x128xf32> to vector<2x8x128xf32>
    %27 = vector.extract_strided_slice %6 {offsets = [0, 640], sizes = [16, 128], strides = [1, 1]} : vector<16x768xf32> to vector<16x128xf32>
    %28 = vector.shape_cast %27 : vector<16x128xf32> to vector<2x8x128xf32>
    "tpu.trace_start"() <{level = 10 : i32, message = "bqd,bkd->bqk"}> : () -> ()
    %cst_10 = arith.constant dense<0.000000e+00> : vector<2x8x8xf32>
    %29 = tpu.matmul %24, %26, %cst_10 {dimension_numbers = #tpu.dot_dimension_numbers<[2], [2], [1], [1], [0, 0, 0, 1, 1, 1], [0], [0]>} : vector<2x8x128xf32>, vector<2x8x128xf32>, vector<2x8x8xf32> -> vector<2x8x8xf32>
    "tpu.trace_stop"() : () -> ()
    %30 = math.exp %29 : vector<2x8x8xf32>
    %cst_11 = arith.constant dense<0.000000e+00> : vector<2x8xf32>
    %31 = vector.multi_reduction <add>, %30, %cst_11 [2] : vector<2x8x8xf32> to vector<2x8xf32>
    %32 = vector.shape_cast %31 : vector<2x8xf32> to vector<2x8x1xf32>
    %cst_12 = arith.constant 9.99999993E-9 : f32
    %33 = vector.broadcast %cst_12 : f32 to vector<2x8x1xf32>
    %34 = arith.addf %32, %33 : vector<2x8x1xf32>
    %35 = tpu.reciprocal %34 {approx = true} : vector<2x8x1xf32> -> vector<2x8x1xf32>
    %36 = vector.broadcast %35 : vector<2x8x1xf32> to vector<2x8x8xf32>
    %37 = arith.mulf %30, %36 : vector<2x8x8xf32>
    "tpu.trace_start"() <{level = 10 : i32, message = "bqk,bkd->bqd"}> : () -> ()
    %cst_13 = arith.constant dense<0.000000e+00> : vector<2x8x128xf32>
    %38 = tpu.matmul %37, %28, %cst_13 {dimension_numbers = #tpu.dot_dimension_numbers<[2], [1], [1], [2], [0, 0, 0, 1, 1, 2], [0], [0]>} : vector<2x8x8xf32>, vector<2x8x128xf32>, vector<2x8x128xf32> -> vector<2x8x128xf32>
    "tpu.trace_stop"() : () -> ()
    %39 = arith.addf %22, %38 : vector<2x8x128xf32>
    %40 = vector.shape_cast %39 : vector<2x8x128xf32> to vector<16x128xf32>
    %41 = arith.truncf %40 : vector<16x128xf32> to vector<16x128xbf16>
    %c0_14 = arith.constant 0 : index
    %c0_15 = arith.constant 0 : index
    %42 = vector.load %arg4[%c0_14, %c0_15] : memref<128x128xbf16, #tpu.memory_space<vmem>>, vector<128x128xbf16>
    %cst_16 = arith.constant dense<0.000000e+00> : vector<16x128xf32>
    %43 = tpu.matmul %41, %42, %cst_16 {dimension_numbers = #tpu.dot_dimension_numbers<[1], [0], [0], [1], [0, 0, 1, 1], [], []>} : vector<16x128xbf16>, vector<128x128xbf16>, vector<16x128xf32> -> vector<16x128xf32>
    %c0_17 = arith.constant 0 : index
    %c0_18 = arith.constant 0 : index
    %44 = vector.load %arg5[%c0_17, %c0_18] : memref<1x128xf32, #tpu.memory_space<vmem>>, vector<1x128xf32>
    %45 = vector.broadcast %44 : vector<1x128xf32> to vector<16x128xf32>
    %46 = arith.addf %43, %45 : vector<16x128xf32>
    %47 = math.tanh %46 : vector<16x128xf32>
    %48 = arith.truncf %47 : vector<16x128xf32> to vector<16x128xbf16>
    %c0_19 = arith.constant 0 : index
    %c0_20 = arith.constant 0 : index
    %49 = vector.load %arg6[%c0_19, %c0_20] : memref<128x1xbf16, #tpu.memory_space<vmem>>, vector<128x1xbf16>
    %cst_21 = arith.constant dense<0.000000e+00> : vector<16x1xf32>
    %50 = tpu.matmul %48, %49, %cst_21 {dimension_numbers = #tpu.dot_dimension_numbers<[1], [0], [0], [1], [0, 0, 1, 1], [], []>} : vector<16x128xbf16>, vector<128x1xbf16>, vector<16x1xf32> -> vector<16x1xf32>
    %c0_22 = arith.constant 0 : index
    %c0_23 = arith.constant 0 : index
    %51 = vector.load %arg7[%c0_22, %c0_23] : memref<1x1xf32, #tpu.memory_space<vmem>>, vector<1x1xf32>
    %52 = vector.broadcast %51 : vector<1x1xf32> to vector<16x1xf32>
    %53 = arith.addf %50, %52 : vector<16x1xf32>
    %54 = math.exp %53 : vector<16x1xf32>
    %55 = vector.shape_cast %54 : vector<16x1xf32> to vector<2x8x1xf32>
    %cst_24 = arith.constant dense<0.000000e+00> : vector<2x1xf32>
    %56 = vector.multi_reduction <add>, %55, %cst_24 [1] : vector<2x8x1xf32> to vector<2x1xf32>
    %57 = vector.shape_cast %56 : vector<2x1xf32> to vector<2x1x1xf32>
    %cst_25 = arith.constant 9.99999993E-9 : f32
    %58 = vector.broadcast %cst_25 : f32 to vector<2x1x1xf32>
    %59 = arith.addf %57, %58 : vector<2x1x1xf32>
    %60 = tpu.reciprocal %59 {approx = true} : vector<2x1x1xf32> -> vector<2x1x1xf32>
    %61 = vector.broadcast %60 : vector<2x1x1xf32> to vector<2x8x1xf32>
    %62 = arith.mulf %55, %61 : vector<2x8x1xf32>
    %63 = vector.broadcast %62 : vector<2x8x1xf32> to vector<2x8x128xf32>
    %64 = arith.mulf %39, %63 : vector<2x8x128xf32>
    %cst_26 = arith.constant dense<0.000000e+00> : vector<2x128xf32>
    %65 = vector.multi_reduction <add>, %64, %cst_26 [1] : vector<2x8x128xf32> to vector<2x128xf32>
    %c0_27 = arith.constant 0 : index
    %c0_28 = arith.constant 0 : index
    %66 = vector.load %arg8[%c0_27, %c0_28] : memref<2x128xf32, #tpu.memory_space<vmem>>, vector<2x128xf32>
    tpu.vector_store %arg8[%c0_27, %c0_28], %65 {strides = array<i32>} : memref<2x128xf32, #tpu.memory_space<vmem>>, vector<2x128xf32>,
    return
  }
  func.func @transform_0(%arg0: i32) -> (i32, i32, i32) {
    %c0_i32 = arith.constant 0 : i32
    %c0_i32_0 = arith.constant 0 : i32
    %c0_i32_1 = arith.constant 0 : i32
    return %arg0, %c0_i32, %c0_i32_0 : i32, i32, i32
  }
  func.func @transform_1(%arg0: i32) -> (i32, i32) {
    %c0_i32 = arith.constant 0 : i32
    %c0_i32_0 = arith.constant 0 : i32
    %c0_i32_1 = arith.constant 0 : i32
    return %c0_i32, %c0_i32_0 : i32, i32
  }
  func.func @transform_2(%arg0: i32) -> (i32, i32) {
    %c0_i32 = arith.constant 0 : i32
    %c0_i32_0 = arith.constant 0 : i32
    %c0_i32_1 = arith.constant 0 : i32
    return %c0_i32, %c0_i32_0 : i32, i32
  }
  func.func @transform_3(%arg0: i32) -> (i32, i32) {
    %c0_i32 = arith.constant 0 : i32
    %c0_i32_0 = arith.constant 0 : i32
    %c0_i32_1 = arith.constant 0 : i32
    return %c0_i32, %c0_i32_0 : i32, i32
  }
  func.func @transform_4(%arg0: i32) -> (i32, i32) {
    %c0_i32 = arith.constant 0 : i32
    %c0_i32_0 = arith.constant 0 : i32
    %c0_i32_1 = arith.constant 0 : i32
    return %c0_i32, %c0_i32_0 : i32, i32
  }
  func.func @transform_5(%arg0: i32) -> (i32, i32) {
    %c0_i32 = arith.constant 0 : i32
    %c0_i32_0 = arith.constant 0 : i32
    %c0_i32_1 = arith.constant 0 : i32
    return %c0_i32, %c0_i32_0 : i32, i32
  }
  func.func @transform_6(%arg0: i32) -> (i32, i32) {
    %c0_i32 = arith.constant 0 : i32
    %c0_i32_0 = arith.constant 0 : i32
    %c0_i32_1 = arith.constant 0 : i32
    return %c0_i32, %c0_i32_0 : i32, i32
  }
  func.func @transform_7(%arg0: i32) -> (i32, i32) {
    %c0_i32 = arith.constant 0 : i32
    %c0_i32_0 = arith.constant 0 : i32
    return %arg0, %c0_i32 : i32, i32
  }
}

</mosaic_0001>

<llo_original>
// kernel: tpu_custom_call.1
$region0: #{tpu_custom_call.1}
  #allocation0 [shape = 'u32[]', space=smem, size = 0x4, offset = 0x4, fixed_abs, tag = 'smem constant byte address 0x4 - core index']
  #allocation1 [shape = 'u32[144,128]{1,0:T(1,128)}', space=vmem, size = 0x12000, scoped, tag = 'internal scratch']
  #allocation2 [shape = 'f32[1,1]{1,0:T(1,128)S(1)}', space=vmem, size = 0x200, scoped, tag = 'scoped memory for tpu_custom_call.1']
  %s0 = inlined_call_operand.vmem [shape: bf16[2,8,32], index: 0, kind: input, shape index: {}]
  %s1 = inlined_call_operand.hbm [shape: bf16[32,768], index: 1, kind: input, shape index: {}]
  %s2 = inlined_call_operand.hbm [shape: f32[1,768], index: 2, kind: input, shape index: {}]
  %s3 = inlined_call_operand.vmem [shape: bf16[128,128], index: 3, kind: input, shape index: {}]
  %s4 = inlined_call_operand.vmem [shape: f32[1,128], index: 4, kind: input, shape index: {}]
  %s5 = inlined_call_operand.vmem [shape: bf16[128,1], index: 5, kind: input, shape index: {}]
  %s6 = inlined_call_operand.<no memory space> [shape: f32[1,1], index: 6, kind: input, shape index: {}]
  %s7 = inlined_call_operand.hbm [shape: f32[2,128], index: 7, kind: output, shape index: {}]
  %s8 = sld [smem:[#allocation0]]
  $region46: #{tpu_custom_call.1} parent=0
    _
  %s10 = ssub.s32 1, %s8
  %s11 = scalar_select 0, %s10, %s8
  %v12 = vstv %s6
  %13 = vst [vmem:[#allocation2] sm:$0x1] %v12
  $region1: #{tpu_custom_call.1} parent=0
    #allocation3 [shape = 'u8[49152]{0}', space=vmem, size = 0xc000, scoped, tag = 'input window, operand 1, single buffered']
    #allocation4 [shape = 's32[1]{0}', space=sflag, size = 0x4, scoped, tag = 'scoped memory for tpu_custom_call.1']
    #allocation5 [shape = 's32[1]{0}', space=sflag, size = 0x4, scoped, tag = 'scoped memory for tpu_custom_call.1']
    #allocation6 [shape = 'u8[3072]{0}', space=vmem, size = 0xc00, scoped, tag = 'input window, operand 2, single buffered']
    #allocation7 [shape = 's32[1]{0}', space=sflag, size = 0x4, scoped, tag = 'scoped memory for tpu_custom_call.1']
    #allocation8 [shape = 'u8[1024]{0}', space=vmem, size = 0x400, scoped, tag = 'output window, operand 0, single buffered']
    %14 = vsyncpa [#allocation4], 0
    %15 = vsyncpa [#allocation7], 0
    %16 = vsyncpa [#allocation5], 0
    // Predicated region
    $region2: #{tpu_custom_call.1} parent=1 // pred_check
      _
    $region3: #{tpu_custom_call.1} parent=1 // pred_check_branch
      %18 = sbr.rel (0) target = $region5
    $region4: #{tpu_custom_call.1} parent=1 // pred_region
      _
    $region5: #{tpu_custom_call.1} parent=1 // pred_fallthru
      _
    // Predicated region
    $region6: #{tpu_custom_call.1} parent=1 // pred_check
      _
    $region7: #{tpu_custom_call.1} parent=1 // pred_check_branch
      %20 = sbr.rel (0) target = $region9
    $region8: #{tpu_custom_call.1} parent=1 // pred_region
      %s22 = ssub.s32 1536, 1536
      %23 = vsyncadd [#allocation4], %s22
      %s24 = sshll.u32 [#allocation3], 4
      %s25 = int_to_ptr.vmem [resolvable:$true] %s24
      %30 = dma.hbm_to_vmem [thread:$0]  %s1, 1536, %s25, [#allocation4], 384, 384, 24
    $region9: #{tpu_custom_call.1} parent=1 // pred_fallthru
      _
    // Predicated region
    $region10: #{tpu_custom_call.1} parent=1 // pred_check
      _
    $region11: #{tpu_custom_call.1} parent=1 // pred_check_branch
      %32 = sbr.rel (0) target = $region13
    $region12: #{tpu_custom_call.1} parent=1 // pred_region
      %s34 = ssub.s32 96, 96
      %35 = vsyncadd [#allocation7], %s34
      %s37 = sshll.u32 [#allocation6], 4
      %s38 = int_to_ptr.vmem [resolvable:$true] %s37
      %40 = dma.hbm_to_vmem [thread:$0]  %s2, 96, %s38, [#allocation7]
    $region13: #{tpu_custom_call.1} parent=1 // pred_fallthru
      _
    // Predicated region
    $region14: #{tpu_custom_call.1} parent=1 // pred_check
      _
    $region15: #{tpu_custom_call.1} parent=1 // pred_check_branch
      %42 = sbr.rel (0) target = $region17
    $region16: #{tpu_custom_call.1} parent=1 // pred_region
      _
    $region17: #{tpu_custom_call.1} parent=1 // pred_fallthru
      _
    // Predicated region
    $region18: #{tpu_custom_call.1} parent=1 // pred_check
      _
    $region19: #{tpu_custom_call.1} parent=1 // pred_check_branch
      %44 = sbr.rel (0) target = $region21
    $region20: #{tpu_custom_call.1} parent=1 // pred_region
      _
    $region21: #{tpu_custom_call.1} parent=1 // pred_fallthru
      _
    // Predicated region
    $region22: #{tpu_custom_call.1} parent=1 // pred_check
      _
    $region23: #{tpu_custom_call.1} parent=1 // pred_check_branch
      %46 = sbr.rel (0) target = $region25
    $region24: #{tpu_custom_call.1} parent=1 // pred_region
      _
    $region25: #{tpu_custom_call.1} parent=1 // pred_fallthru
      _
    // Predicated region
    $region26: #{tpu_custom_call.1} parent=1 // pred_check
      _
    $region27: #{tpu_custom_call.1} parent=1 // pred_check_branch
      %48 = sbr.rel (0) target = $region29
    $region28: #{tpu_custom_call.1} parent=1 // pred_region
      _
    $region29: #{tpu_custom_call.1} parent=1 // pred_fallthru
      _
    // Predicated region
    $region30: #{tpu_custom_call.1} parent=1 // pred_check
      _
    $region31: #{tpu_custom_call.1} parent=1 // pred_check_branch
      %50 = sbr.rel (0) target = $region33
    $region32: #{tpu_custom_call.1} parent=1 // pred_region
      %51 = dma.done [#allocation4], 1536
    $region33: #{tpu_custom_call.1} parent=1 // pred_fallthru
      _
    // Predicated region
    $region34: #{tpu_custom_call.1} parent=1 // pred_check
      _
    $region35: #{tpu_custom_call.1} parent=1 // pred_check_branch
      %53 = sbr.rel (0) target = $region37
    $region36: #{tpu_custom_call.1} parent=1 // pred_region
      %54 = dma.done [#allocation7], 96
    $region37: #{tpu_custom_call.1} parent=1 // pred_fallthru
      _
    %v56 = vld [vmem:[%s0] sm:$0xf]
    %v57 = vld [vmem:[%s0 + $0x4] sm:$0xf]
    %v58 = vld [vmem:[#allocation3] sm:$0xff]
    %v59 = vld [vmem:[#allocation3 + $0x8] sm:$0xff]
    %v60 = vld [vmem:[#allocation3 + $0x10] sm:$0xff]
    %v61 = vld [vmem:[#allocation3 + $0x18] sm:$0xff]
    %v62 = vld [vmem:[#allocation3 + $0x20] sm:$0xff]
    %v63 = vld [vmem:[#allocation3 + $0x28] sm:$0xff]
    %v64 = vld [vmem:[#allocation3 + $0x30] sm:$0xff]
    %v65 = vld [vmem:[#allocation3 + $0x38] sm:$0xff]
    %v66 = vld [vmem:[#allocation3 + $0x40] sm:$0xff]
    %v67 = vld [vmem:[#allocation3 + $0x48] sm:$0xff]
    %v68 = vld [vmem:[#allocation3 + $0x50] sm:$0xff]
    %v69 = vld [vmem:[#allocation3 + $0x58] sm:$0xff]
    %v70 = vld [vmem:[#allocation6] sm:$0x3f]
    %v72 = vlaneseq
    %v73 = vshrl.u32 %v72, 7
    %v74 = vsub.s32 0, %v73
    %v75 = vrot.slane %v70, %v74
    %v76 = vlaneseq
    %v77 = vshrl.u32 %v76, 7
    %v78 = vsub.s32 1, %v77
    %v79 = vrot.slane %v70, %v78
    %v80 = vlaneseq
    %v81 = vshrl.u32 %v80, 7
    %v82 = vsub.s32 2, %v81
    %v83 = vrot.slane %v70, %v82
    %v84 = vlaneseq
    %v85 = vshrl.u32 %v84, 7
    %v86 = vsub.s32 3, %v85
    %v87 = vrot.slane %v70, %v86
    %v88 = vlaneseq
    %v89 = vshrl.u32 %v88, 7
    %v90 = vsub.s32 4, %v89
    %v91 = vrot.slane %v70, %v90
    %v92 = vlaneseq
    %v93 = vshrl.u32 %v92, 7
    %v94 = vsub.s32 5, %v93
    %v95 = vrot.slane %v70, %v94
    %v104 = vunpack.c.l.b16 %v56
    %v105 = vunpack.c.l.b16 %v57
    %v106 = vpack.c.b16 %v105, %v104
    %v119 = vunpack.c.l.b16 %v58
    %v120 = vunpack.c.h.b16 %v58
    %v121 = vunpack.c.l.b16 %v59
    %v122 = vunpack.c.h.b16 %v59
    %v123 = vunpack.c.l.b16 %v60
    %v124 = vunpack.c.h.b16 %v60
    %v125 = vunpack.c.l.b16 %v61
    %v126 = vunpack.c.h.b16 %v61
    %v127 = vunpack.c.l.b16 %v62
    %v128 = vunpack.c.h.b16 %v62
    %v129 = vunpack.c.l.b16 %v63
    %v130 = vunpack.c.h.b16 %v63
    %v131 = vunpack.c.l.b16 %v64
    %v132 = vunpack.c.h.b16 %v64
    %v133 = vunpack.c.l.b16 %v65
    %v134 = vunpack.c.h.b16 %v65
    %v135 = vunpack.c.l.b16 %v66
    %v136 = vunpack.c.h.b16 %v66
    %v137 = vunpack.c.l.b16 %v67
    %v138 = vunpack.c.h.b16 %v67
    %v139 = vunpack.c.l.b16 %v68
    %v140 = vunpack.c.h.b16 %v68
    %v141 = vunpack.c.l.b16 %v69
    %v142 = vunpack.c.h.b16 %v69
    %v143 = vpack.c.b16 %v125, %v119
    %v144 = vpack.c.b16 %v126, %v120
    %v145 = vpack.c.b16 %v127, %v121
    %v146 = vpack.c.b16 %v128, %v122
    %v147 = vpack.c.b16 %v129, %v123
    %v148 = vpack.c.b16 %v130, %v124
    %v149 = vpack.c.b16 %v137, %v131
    %v150 = vpack.c.b16 %v138, %v132
    %v151 = vpack.c.b16 %v139, %v133
    %v152 = vpack.c.b16 %v140, %v134
    %v153 = vpack.c.b16 %v141, %v135
    %v154 = vpack.c.b16 %v142, %v136
    %vm167 = vcmask 261120
    %v169 = vsel %vm167, %v106, 0
    %171 = vmatprep.subr.bf16.mxu0 0
    %172 = vmatpush1.bf16.msra.mxu0 0
    %173 = vmatprep.subr.bf16.mxu0 0
    %174 = vmatpush1.bf16.msra.mxu0 0
    %175 = vmatprep.subr.bf16.mxu0 0
    %176 = vmatpush1.bf16.msra.mxu0 0
    %177 = vmatprep.subr.bf16.mxu0 0
    %178 = vmatpush1.bf16.msra.mxu0 0
    %179 = vmatprep.subr.bf16.mxu0 0
    %180 = vmatpush1.bf16.msra.mxu0 0
    %181 = vmatprep.subr.bf16.mxu0 0
    %182 = vmatpush1.bf16.msra.mxu0 0
    %183 = vmatprep.subr.bf16.mxu0 %v150
    %184 = vmatpush1.bf16.msra.mxu0 %v149
    %185 = vmatprep.subr.bf16.mxu0 %v144
    %186 = vmatpush1.bf16.msra.mxu0 %v143
    %187 = vmatprep.subr.bf16.mxu0 0
    %188 = vmatpush2.bf16.msra.mxu0 0
    %189 = vmatprep.subr.bf16.mxu0 0
    %190 = vmatpush2.bf16.msra.mxu0 0
    %191 = vmatprep.subr.bf16.mxu0 0
    %192 = vmatpush2.bf16.msra.mxu0 0
    %193 = vmatprep.subr.bf16.mxu0 0
    %194 = vmatpush2.bf16.msra.mxu0 0
    %195 = vmatprep.subr.bf16.mxu0 0
    %196 = vmatpush2.bf16.msra.mxu0 0
    %197 = vmatprep.subr.bf16.mxu0 0
    %198 = vmatpush2.bf16.msra.mxu0 0
    %199 = vmatprep.subr.bf16.mxu0 0
    %200 = vmatpush2.bf16.msra.mxu0 0
    %201 = vmatprep.subr.bf16.mxu0 0
    %202 = vmatpush2.bf16.msra.mxu0 0
    %203 = vmatprep.mubr.bf16.mxu0 0
    %204 = vmatmul.mubr.bf16.gmra.mxu0 %v169
    %v205 = vpop.f32.mrf.mxu0
    %v206 = vadd.f32 %v75, %v205
    %v207 = vpop.f32.mrf.mxu0
    %v208 = vadd.f32 %v79, %v207
    %v209 = vpop.f32.mrf.mxu0
    %v210 = vadd.f32 %v75, %v209
    %v211 = vpop.f32.mrf.mxu0
    %v212 = vadd.f32 %v79, %v211
    %213 = vdwg.mxu0
    %214 = vmatprep.subr.bf16.mxu0 0
    %215 = vmatpush1.bf16.msra.mxu0 0
    %216 = vmatprep.subr.bf16.mxu0 0
    %217 = vmatpush1.bf16.msra.mxu0 0
    %218 = vmatprep.subr.bf16.mxu0 0
    %219 = vmatpush1.bf16.msra.mxu0 0
    %220 = vmatprep.subr.bf16.mxu0 0
    %221 = vmatpush1.bf16.msra.mxu0 0
    %222 = vmatprep.subr.bf16.mxu0 0
    %223 = vmatpush1.bf16.msra.mxu0 0
    %224 = vmatprep.subr.bf16.mxu0 0
    %225 = vmatpush1.bf16.msra.mxu0 0
    %226 = vmatprep.subr.bf16.mxu0 %v152
    %227 = vmatpush1.bf16.msra.mxu0 %v151
    %228 = vmatprep.subr.bf16.mxu0 %v146
    %229 = vmatpush1.bf16.msra.mxu0 %v145
    %230 = vmatprep.subr.bf16.mxu0 0
    %231 = vmatpush2.bf16.msra.mxu0 0
    %232 = vmatprep.subr.bf16.mxu0 0
    %233 = vmatpush2.bf16.msra.mxu0 0
    %234 = vmatprep.subr.bf16.mxu0 0
    %235 = vmatpush2.bf16.msra.mxu0 0
    %236 = vmatprep.subr.bf16.mxu0 0
    %237 = vmatpush2.bf16.msra.mxu0 0
    %238 = vmatprep.subr.bf16.mxu0 0
    %239 = vmatpush2.bf16.msra.mxu0 0
    %240 = vmatprep.subr.bf16.mxu0 0
    %241 = vmatpush2.bf16.msra.mxu0 0
    %242 = vmatprep.subr.bf16.mxu0 0
    %243 = vmatpush2.bf16.msra.mxu0 0
    %244 = vmatprep.subr.bf16.mxu0 0
    %245 = vmatpush2.bf16.msra.mxu0 0
    %246 = vmatprep.mubr.bf16.mxu0 0
    %247 = vmatmul.mubr.bf16.gmra.mxu0 %v169
    %v248 = vpop.f32.mrf.mxu0
    %v249 = vadd.f32 %v83, %v248
    %v250 = vpop.f32.mrf.mxu0
    %v251 = vadd.f32 %v87, %v250
    %v252 = vpop.f32.mrf.mxu0
    %v253 = vadd.f32 %v83, %v252
    %v254 = vpop.f32.mrf.mxu0
    %v255 = vadd.f32 %v87, %v254
    %256 = vdwg.mxu0
    %257 = vmatprep.subr.bf16.mxu0 0
    %258 = vmatpush1.bf16.msra.mxu0 0
    %259 = vmatprep.subr.bf16.mxu0 0
    %260 = vmatpush1.bf16.msra.mxu0 0
    %261 = vmatprep.subr.bf16.mxu0 0
    %262 = vmatpush1.bf16.msra.mxu0 0
    %263 = vmatprep.subr.bf16.mxu0 0
    %264 = vmatpush1.bf16.msra.mxu0 0
    %265 = vmatprep.subr.bf16.mxu0 0
    %266 = vmatpush1.bf16.msra.mxu0 0
    %267 = vmatprep.subr.bf16.mxu0 0
    %268 = vmatpush1.bf16.msra.mxu0 0
    %269 = vmatprep.subr.bf16.mxu0 %v154
    %270 = vmatpush1.bf16.msra.mxu0 %v153
    %271 = vmatprep.subr.bf16.mxu0 %v148
    %272 = vmatpush1.bf16.msra.mxu0 %v147
    %273 = vmatprep.subr.bf16.mxu0 0
    %274 = vmatpush2.bf16.msra.mxu0 0
    %275 = vmatprep.subr.bf16.mxu0 0
    %276 = vmatpush2.bf16.msra.mxu0 0
    %277 = vmatprep.subr.bf16.mxu0 0
    %278 = vmatpush2.bf16.msra.mxu0 0
    %279 = vmatprep.subr.bf16.mxu0 0
    %280 = vmatpush2.bf16.msra.mxu0 0
    %281 = vmatprep.subr.bf16.mxu0 0
    %282 = vmatpush2.bf16.msra.mxu0 0
    %283 = vmatprep.subr.bf16.mxu0 0
    %284 = vmatpush2.bf16.msra.mxu0 0
    %285 = vmatprep.subr.bf16.mxu0 0
    %286 = vmatpush2.bf16.msra.mxu0 0
    %287 = vmatprep.subr.bf16.mxu0 0
    %288 = vmatpush2.bf16.msra.mxu0 0
    %289 = vmatprep.mubr.bf16.mxu0 0
    %290 = vmatmul.mubr.bf16.gmra.mxu0 %v169
    %v291 = vpop.f32.mrf.mxu0
    %v292 = vadd.f32 %v91, %v291
    %v293 = vpop.f32.mrf.mxu0
    %v294 = vadd.f32 %v95, %v293
    %v295 = vpop.f32.mrf.mxu0
    %v296 = vadd.f32 %v91, %v295
    %v297 = vpop.f32.mrf.mxu0
    %v298 = vadd.f32 %v95, %v297
    %299 = vdwg.mxu0
    %300 = vmatprep.subr.mxu0 0.0
    %301 = vmatpush1.xpose.msra.mxu0 0.0
    %302 = vmatprep.subr.mxu0 0.0
    %303 = vmatpush1.xpose.msra.mxu0 0.0
    %304 = vmatprep.subr.mxu0 0.0
    %305 = vmatpush1.xpose.msra.mxu0 0.0
    %306 = vmatprep.subr.mxu0 0.0
    %307 = vmatpush1.xpose.msra.mxu0 0.0
    %308 = vmatprep.subr.mxu0 0.0
    %309 = vmatpush1.xpose.msra.mxu0 0.0
    %310 = vmatprep.subr.mxu0 0.0
    %311 = vmatpush1.xpose.msra.mxu0 0.0
    %312 = vmatprep.subr.mxu0 0.0
    %313 = vmatpush1.xpose.msra.mxu0 0.0
    %314 = vmatprep.subr.mxu0 0.0
    %315 = vmatpush1.xpose.msra.mxu0 0.0
    %316 = vmatprep.subr.mxu0 0.0
    %317 = vmatpush1.xpose.msra.mxu0 0.0
    %318 = vmatprep.subr.mxu0 0.0
    %319 = vmatpush1.xpose.msra.mxu0 0.0
    %320 = vmatprep.subr.mxu0 0.0
    %321 = vmatpush1.xpose.msra.mxu0 0.0
    %322 = vmatprep.subr.mxu0 0.0
    %323 = vmatpush1.xpose.msra.mxu0 0.0
    %324 = vmatprep.subr.mxu0 0.0
    %325 = vmatpush1.xpose.msra.mxu0 0.0
    %326 = vmatprep.subr.mxu0 0.0
    %327 = vmatpush1.xpose.msra.mxu0 0.0
    %328 = vmatprep.subr.mxu0 0.0
    %329 = vmatpush1.xpose.msra.mxu0 0.0
    %330 = vmatprep.subr.mxu0 0.0
    %331 = vmatpush1.xpose.msra.mxu0 %v249
    %332 = vmatprep.subr.mxu0 0.0
    %333 = vmatpush2.xpose.msra.mxu0 0.0
    %334 = vmatprep.subr.mxu0 0.0
    %335 = vmatpush2.xpose.msra.mxu0 0.0
    %336 = vmatprep.subr.mxu0 0.0
    %337 = vmatpush2.xpose.msra.mxu0 0.0
    %338 = vmatprep.subr.mxu0 0.0
    %339 = vmatpush2.xpose.msra.mxu0 0.0
    %340 = vmatprep.subr.mxu0 0.0
    %341 = vmatpush2.xpose.msra.mxu0 0.0
    %342 = vmatprep.subr.mxu0 0.0
    %343 = vmatpush2.xpose.msra.mxu0 0.0
    %344 = vmatprep.subr.mxu0 0.0
    %345 = vmatpush2.xpose.msra.mxu0 0.0
    %346 = vmatprep.subr.mxu0 0.0
    %347 = vmatpush2.xpose.msra.mxu0 0.0
    %348 = vmatprep.subr.mxu0 0.0
    %349 = vmatpush2.xpose.msra.mxu0 0.0
    %350 = vmatprep.subr.mxu0 0.0
    %351 = vmatpush2.xpose.msra.mxu0 0.0
    %352 = vmatprep.subr.mxu0 0.0
    %353 = vmatpush2.xpose.msra.mxu0 0.0
    %354 = vmatprep.subr.mxu0 0.0
    %355 = vmatpush2.xpose.msra.mxu0 0.0
    %356 = vmatprep.subr.mxu0 0.0
    %357 = vmatpush2.xpose.msra.mxu0 0.0
    %358 = vmatprep.subr.mxu0 0.0
    %359 = vmatpush2.xpose.msra.mxu0 0.0
    %360 = vmatprep.subr.mxu0 0.0
    %361 = vmatpush2.xpose.msra.mxu0 0.0
    %362 = vmatprep.subr.mxu0 0.0
    %363 = vmatpush2.xpose.msra.mxu0 0.0
    %364 = vmatprep.mubr.f32.mxu0 0.0
    %365 = vmatmul.mubr.f32.gmra.mxu0 %v206
    %v366 = vpop.f32.mrf.mxu0
    %v367 = vadd.f32 0.0, %v366
    %v368 = vpop.f32.mrf.mxu0
    %369 = vdwg.mxu0
    %370 = vmatprep.subr.mxu0 0.0
    %371 = vmatpush1.xpose.msra.mxu0 0.0
    %372 = vmatprep.subr.mxu0 0.0
    %373 = vmatpush1.xpose.msra.mxu0 0.0
    %374 = vmatprep.subr.mxu0 0.0
    %375 = vmatpush1.xpose.msra.mxu0 0.0
    %376 = vmatprep.subr.mxu0 0.0
    %377 = vmatpush1.xpose.msra.mxu0 0.0
    %378 = vmatprep.subr.mxu0 0.0
    %379 = vmatpush1.xpose.msra.mxu0 0.0
    %380 = vmatprep.subr.mxu0 0.0
    %381 = vmatpush1.xpose.msra.mxu0 0.0
    %382 = vmatprep.subr.mxu0 0.0
    %383 = vmatpush1.xpose.msra.mxu0 0.0
    %384 = vmatprep.subr.mxu0 0.0
    %385 = vmatpush1.xpose.msra.mxu0 0.0
    %386 = vmatprep.subr.mxu0 0.0
    %387 = vmatpush1.xpose.msra.mxu0 0.0
    %388 = vmatprep.subr.mxu0 0.0
    %389 = vmatpush1.xpose.msra.mxu0 0.0
    %390 = vmatprep.subr.mxu0 0.0
    %391 = vmatpush1.xpose.msra.mxu0 0.0
    %392 = vmatprep.subr.mxu0 0.0
    %393 = vmatpush1.xpose.msra.mxu0 0.0
    %394 = vmatprep.subr.mxu0 0.0
    %395 = vmatpush1.xpose.msra.mxu0 0.0
    %396 = vmatprep.subr.mxu0 0.0
    %397 = vmatpush1.xpose.msra.mxu0 0.0
    %398 = vmatprep.subr.mxu0 0.0
    %399 = vmatpush1.xpose.msra.mxu0 0.0
    %400 = vmatprep.subr.mxu0 0.0
    %401 = vmatpush1.xpose.msra.mxu0 %v253
    %402 = vmatprep.subr.mxu0 0.0
    %403 = vmatpush2.xpose.msra.mxu0 0.0
    %404 = vmatprep.subr.mxu0 0.0
    %405 = vmatpush2.xpose.msra.mxu0 0.0
    %406 = vmatprep.subr.mxu0 0.0
    %407 = vmatpush2.xpose.msra.mxu0 0.0
    %408 = vmatprep.subr.mxu0 0.0
    %409 = vmatpush2.xpose.msra.mxu0 0.0
    %410 = vmatprep.subr.mxu0 0.0
    %411 = vmatpush2.xpose.msra.mxu0 0.0
    %412 = vmatprep.subr.mxu0 0.0
    %413 = vmatpush2.xpose.msra.mxu0 0.0
    %414 = vmatprep.subr.mxu0 0.0
    %415 = vmatpush2.xpose.msra.mxu0 0.0
    %416 = vmatprep.subr.mxu0 0.0
    %417 = vmatpush2.xpose.msra.mxu0 0.0
    %418 = vmatprep.subr.mxu0 0.0
    %419 = vmatpush2.xpose.msra.mxu0 0.0
    %420 = vmatprep.subr.mxu0 0.0
    %421 = vmatpush2.xpose.msra.mxu0 0.0
    %422 = vmatprep.subr.mxu0 0.0
    %423 = vmatpush2.xpose.msra.mxu0 0.0
    %424 = vmatprep.subr.mxu0 0.0
    %425 = vmatpush2.xpose.msra.mxu0 0.0
    %426 = vmatprep.subr.mxu0 0.0
    %427 = vmatpush2.xpose.msra.mxu0 0.0
    %428 = vmatprep.subr.mxu0 0.0
    %429 = vmatpush2.xpose.msra.mxu0 0.0
    %430 = vmatprep.subr.mxu0 0.0
    %431 = vmatpush2.xpose.msra.mxu0 0.0
    %432 = vmatprep.subr.mxu0 0.0
    %433 = vmatpush2.xpose.msra.mxu0 0.0
    %434 = vmatprep.mubr.f32.mxu0 0.0
    %435 = vmatmul.mubr.f32.gmra.mxu0 %v210
    %v436 = vpop.f32.mrf.mxu0
    %v437 = vadd.f32 0.0, %v436
    %v438 = vpop.f32.mrf.mxu0
    %439 = vdwg.mxu0
    %v440 = vmul.f32 %v367, 1.442695
    %v441 = vpow.pop %v440
    %v442 = vmul.f32 %v437, 1.442695
    %v443 = vpow.pop %v442
    %vm444 = vcmask 64512
    %v445 = vsel %vm444, %v441, 0.0
    %446 = vadd.xlane.f32.xlu0 %v445
    %v447 = vpop.xlane.xlu0 %446
    %v448 = vsel %vm444, %v443, 0.0
    %449 = vadd.xlane.f32.xlu0 %v448
    %v450 = vpop.xlane.xlu0 %449
    %v451 = vadd.f32 %v447, 1e-08
    %v452 = vadd.f32 %v450, 1e-08
    %v453 = vrcp.pop %v451
    %v454 = vrcp.pop %v452
    %v455 = vmul.f32 %v441, %v453
    %v456 = vmul.f32 %v443, %v454
    %457 = vmatprep.subr.mxu0 0.0
    %458 = vmatpush1.xpose.msra.mxu0 0.0
    %459 = vmatprep.subr.mxu0 0.0
    %460 = vmatpush1.xpose.msra.mxu0 0.0
    %461 = vmatprep.subr.mxu0 0.0
    %462 = vmatpush1.xpose.msra.mxu0 0.0
    %463 = vmatprep.subr.mxu0 0.0
    %464 = vmatpush1.xpose.msra.mxu0 0.0
    %465 = vmatprep.subr.mxu0 0.0
    %466 = vmatpush1.xpose.msra.mxu0 0.0
    %467 = vmatprep.subr.mxu0 0.0
    %468 = vmatpush1.xpose.msra.mxu0 0.0
    %469 = vmatprep.subr.mxu0 0.0
    %470 = vmatpush1.xpose.msra.mxu0 0.0
    %471 = vmatprep.subr.mxu0 0.0
    %472 = vmatpush1.xpose.msra.mxu0 0.0
    %473 = vmatprep.subr.mxu0 0.0
    %474 = vmatpush1.xpose.msra.mxu0 0.0
    %475 = vmatprep.subr.mxu0 0.0
    %476 = vmatpush1.xpose.msra.mxu0 0.0
    %477 = vmatprep.subr.mxu0 0.0
    %478 = vmatpush1.xpose.msra.mxu0 0.0
    %479 = vmatprep.subr.mxu0 0.0
    %480 = vmatpush1.xpose.msra.mxu0 0.0
    %481 = vmatprep.subr.mxu0 0.0
    %482 = vmatpush1.xpose.msra.mxu0 0.0
    %483 = vmatprep.subr.mxu0 0.0
    %484 = vmatpush1.xpose.msra.mxu0 0.0
    %485 = vmatprep.subr.mxu0 0.0
    %486 = vmatpush1.xpose.msra.mxu0 0.0
    %487 = vmatprep.subr.mxu0 0.0
    %488 = vmatpush1.xpose.msra.mxu0 %v251
    %489 = vmatprep.subr.mxu0 0.0
    %490 = vmatpush2.xpose.msra.mxu0 0.0
    %491 = vmatprep.subr.mxu0 0.0
    %492 = vmatpush2.xpose.msra.mxu0 0.0
    %493 = vmatprep.subr.mxu0 0.0
    %494 = vmatpush2.xpose.msra.mxu0 0.0
    %495 = vmatprep.subr.mxu0 0.0
    %496 = vmatpush2.xpose.msra.mxu0 0.0
    %497 = vmatprep.subr.mxu0 0.0
    %498 = vmatpush2.xpose.msra.mxu0 0.0
    %499 = vmatprep.subr.mxu0 0.0
    %500 = vmatpush2.xpose.msra.mxu0 0.0
    %501 = vmatprep.subr.mxu0 0.0
    %502 = vmatpush2.xpose.msra.mxu0 0.0
    %503 = vmatprep.subr.mxu0 0.0
    %504 = vmatpush2.xpose.msra.mxu0 0.0
    %505 = vmatprep.subr.mxu0 0.0
    %506 = vmatpush2.xpose.msra.mxu0 0.0
    %507 = vmatprep.subr.mxu0 0.0
    %508 = vmatpush2.xpose.msra.mxu0 0.0
    %509 = vmatprep.subr.mxu0 0.0
    %510 = vmatpush2.xpose.msra.mxu0 0.0
    %511 = vmatprep.subr.mxu0 0.0
    %512 = vmatpush2.xpose.msra.mxu0 0.0
    %513 = vmatprep.subr.mxu0 0.0
    %514 = vmatpush2.xpose.msra.mxu0 0.0
    %515 = vmatprep.subr.mxu0 0.0
    %516 = vmatpush2.xpose.msra.mxu0 0.0
    %517 = vmatprep.subr.mxu0 0.0
    %518 = vmatpush2.xpose.msra.mxu0 0.0
    %519 = vmatprep.subr.mxu0 0.0
    %520 = vmatpush2.xpose.msra.mxu0 0.0
    %521 = vmatprep.mubr.f32.mxu0 0.0
    %522 = vmatmul.mubr.f32.gmra.mxu0 %v208
    %v523 = vpop.f32.mrf.mxu0
    %v524 = vadd.f32 0.0, %v523
    %v525 = vpop.f32.mrf.mxu0
    %526 = vdwg.mxu0
    %527 = vmatprep.subr.mxu0 0.0
    %528 = vmatpush1.xpose.msra.mxu0 0.0
    %529 = vmatprep.subr.mxu0 0.0
    %530 = vmatpush1.xpose.msra.mxu0 0.0
    %531 = vmatprep.subr.mxu0 0.0
    %532 = vmatpush1.xpose.msra.mxu0 0.0
    %533 = vmatprep.subr.mxu0 0.0
    %534 = vmatpush1.xpose.msra.mxu0 0.0
    %535 = vmatprep.subr.mxu0 0.0
    %536 = vmatpush1.xpose.msra.mxu0 0.0
    %537 = vmatprep.subr.mxu0 0.0
    %538 = vmatpush1.xpose.msra.mxu0 0.0
    %539 = vmatprep.subr.mxu0 0.0
    %540 = vmatpush1.xpose.msra.mxu0 0.0
    %541 = vmatprep.subr.mxu0 0.0
    %542 = vmatpush1.xpose.msra.mxu0 0.0
    %543 = vmatprep.subr.mxu0 0.0
    %544 = vmatpush1.xpose.msra.mxu0 0.0
    %545 = vmatprep.subr.mxu0 0.0
    %546 = vmatpush1.xpose.msra.mxu0 0.0
    %547 = vmatprep.subr.mxu0 0.0
    %548 = vmatpush1.xpose.msra.mxu0 0.0
    %549 = vmatprep.subr.mxu0 0.0
    %550 = vmatpush1.xpose.msra.mxu0 0.0
    %551 = vmatprep.subr.mxu0 0.0
    %552 = vmatpush1.xpose.msra.mxu0 0.0
    %553 = vmatprep.subr.mxu0 0.0
    %554 = vmatpush1.xpose.msra.mxu0 0.0
    %555 = vmatprep.subr.mxu0 0.0
    %556 = vmatpush1.xpose.msra.mxu0 0.0
    %557 = vmatprep.subr.mxu0 0.0
    %558 = vmatpush1.xpose.msra.mxu0 %v255
    %559 = vmatprep.subr.mxu0 0.0
    %560 = vmatpush2.xpose.msra.mxu0 0.0
    %561 = vmatprep.subr.mxu0 0.0
    %562 = vmatpush2.xpose.msra.mxu0 0.0
    %563 = vmatprep.subr.mxu0 0.0
    %564 = vmatpush2.xpose.msra.mxu0 0.0
    %565 = vmatprep.subr.mxu0 0.0
    %566 = vmatpush2.xpose.msra.mxu0 0.0
    %567 = vmatprep.subr.mxu0 0.0
    %568 = vmatpush2.xpose.msra.mxu0 0.0
    %569 = vmatprep.subr.mxu0 0.0
    %570 = vmatpush2.xpose.msra.mxu0 0.0
    %571 = vmatprep.subr.mxu0 0.0
    %572 = vmatpush2.xpose.msra.mxu0 0.0
    %573 = vmatprep.subr.mxu0 0.0
    %574 = vmatpush2.xpose.msra.mxu0 0.0
    %575 = vmatprep.subr.mxu0 0.0
    %576 = vmatpush2.xpose.msra.mxu0 0.0
    %577 = vmatprep.subr.mxu0 0.0
    %578 = vmatpush2.xpose.msra.mxu0 0.0
    %579 = vmatprep.subr.mxu0 0.0
    %580 = vmatpush2.xpose.msra.mxu0 0.0
    %581 = vmatprep.subr.mxu0 0.0
    %582 = vmatpush2.xpose.msra.mxu0 0.0
    %583 = vmatprep.subr.mxu0 0.0
    %584 = vmatpush2.xpose.msra.mxu0 0.0
    %585 = vmatprep.subr.mxu0 0.0
    %586 = vmatpush2.xpose.msra.mxu0 0.0
    %587 = vmatprep.subr.mxu0 0.0
    %588 = vmatpush2.xpose.msra.mxu0 0.0
    %589 = vmatprep.subr.mxu0 0.0
    %590 = vmatpush2.xpose.msra.mxu0 0.0
    %591 = vmatprep.mubr.f32.mxu0 0.0
    %592 = vmatmul.mubr.f32.gmra.mxu0 %v212
    %v593 = vpop.f32.mrf.mxu0
    %v594 = vadd.f32 0.0, %v593
    %v595 = vpop.f32.mrf.mxu0
    %596 = vdwg.mxu0
    %v597 = vmul.f32 %v524, 1.442695
    %v598 = vpow.pop %v597
    %v599 = vmul.f32 %v594, 1.442695
    %v600 = vpow.pop %v599
    %v601 = vsel %vm444, %v598, 0.0
    %602 = vadd.xlane.f32.xlu0 %v601
    %v603 = vpop.xlane.xlu0 %602
    %v604 = vsel %vm444, %v600, 0.0
    %605 = vadd.xlane.f32.xlu0 %v604
    %v606 = vpop.xlane.xlu0 %605
    %v607 = vadd.f32 %v603, 1e-08
    %v608 = vadd.f32 %v606, 1e-08
    %v609 = vrcp.pop %v607
    %v610 = vrcp.pop %v608
    %v611 = vmul.f32 %v598, %v609
    %v612 = vmul.f32 %v600, %v610
    %v614 = vsel %vm444, %v611, 0
    %616 = vmatprep.subr.mxu0 0.0
    %617 = vmatpush1.msra.mxu0 0.0
    %618 = vmatprep.subr.mxu0 0.0
    %619 = vmatpush1.msra.mxu0 0.0
    %620 = vmatprep.subr.mxu0 0.0
    %621 = vmatpush1.msra.mxu0 0.0
    %622 = vmatprep.subr.mxu0 0.0
    %623 = vmatpush1.msra.mxu0 0.0
    %624 = vmatprep.subr.mxu0 0.0
    %625 = vmatpush1.msra.mxu0 0.0
    %626 = vmatprep.subr.mxu0 0.0
    %627 = vmatpush1.msra.mxu0 0.0
    %628 = vmatprep.subr.mxu0 0.0
    %629 = vmatpush1.msra.mxu0 0.0
    %630 = vmatprep.subr.mxu0 0.0
    %631 = vmatpush1.msra.mxu0 0.0
    %632 = vmatprep.subr.mxu0 0.0
    %633 = vmatpush1.msra.mxu0 0.0
    %634 = vmatprep.subr.mxu0 0.0
    %635 = vmatpush1.msra.mxu0 0.0
    %636 = vmatprep.subr.mxu0 0.0
    %637 = vmatpush1.msra.mxu0 0.0
    %638 = vmatprep.subr.mxu0 0.0
    %639 = vmatpush1.msra.mxu0 0.0
    %640 = vmatprep.subr.mxu0 0.0
    %641 = vmatpush1.msra.mxu0 0.0
    %642 = vmatprep.subr.mxu0 0.0
    %643 = vmatpush1.msra.mxu0 0.0
    %644 = vmatprep.subr.mxu0 0.0
    %645 = vmatpush1.msra.mxu0 0.0
    %646 = vmatprep.subr.mxu0 0.0
    %647 = vmatpush1.msra.mxu0 %v294
    %648 = vmatprep.subr.mxu0 0.0
    %649 = vmatpush2.msra.mxu0 0.0
    %650 = vmatprep.subr.mxu0 0.0
    %651 = vmatpush2.msra.mxu0 0.0
    %652 = vmatprep.subr.mxu0 0.0
    %653 = vmatpush2.msra.mxu0 0.0
    %654 = vmatprep.subr.mxu0 0.0
    %655 = vmatpush2.msra.mxu0 0.0
    %656 = vmatprep.subr.mxu0 0.0
    %657 = vmatpush2.msra.mxu0 0.0
    %658 = vmatprep.subr.mxu0 0.0
    %659 = vmatpush2.msra.mxu0 0.0
    %660 = vmatprep.subr.mxu0 0.0
    %661 = vmatpush2.msra.mxu0 0.0
    %662 = vmatprep.subr.mxu0 0.0
    %663 = vmatpush2.msra.mxu0 0.0
    %664 = vmatprep.subr.mxu0 0.0
    %665 = vmatpush2.msra.mxu0 0.0
    %666 = vmatprep.subr.mxu0 0.0
    %667 = vmatpush2.msra.mxu0 0.0
    %668 = vmatprep.subr.mxu0 0.0
    %669 = vmatpush2.msra.mxu0 0.0
    %670 = vmatprep.subr.mxu0 0.0
    %671 = vmatpush2.msra.mxu0 0.0
    %672 = vmatprep.subr.mxu0 0.0
    %673 = vmatpush2.msra.mxu0 0.0
    %674 = vmatprep.subr.mxu0 0.0
    %675 = vmatpush2.msra.mxu0 0.0
    %676 = vmatprep.subr.mxu0 0.0
    %677 = vmatpush2.msra.mxu0 0.0
    %678 = vmatprep.subr.mxu0 0.0
    %679 = vmatpush2.msra.mxu0 0.0
    %680 = vmatprep.mubr.f32.mxu0 0.0
    %681 = vmatmul.mubr.f32.gmra.mxu0 %v614
    %v682 = vpop.f32.mrf.mxu0
    %v683 = vadd.f32 0.0, %v682
    %v684 = vpop.f32.mrf.mxu0
    %685 = vdwg.mxu0
    %v687 = vsel %vm444, %v612, 0
    %689 = vmatprep.subr.mxu0 0.0
    %690 = vmatpush1.msra.mxu0 0.0
    %691 = vmatprep.subr.mxu0 0.0
    %692 = vmatpush1.msra.mxu0 0.0
    %693 = vmatprep.subr.mxu0 0.0
    %694 = vmatpush1.msra.mxu0 0.0
    %695 = vmatprep.subr.mxu0 0.0
    %696 = vmatpush1.msra.mxu0 0.0
    %697 = vmatprep.subr.mxu0 0.0
    %698 = vmatpush1.msra.mxu0 0.0
    %699 = vmatprep.subr.mxu0 0.0
    %700 = vmatpush1.msra.mxu0 0.0
    %701 = vmatprep.subr.mxu0 0.0
    %702 = vmatpush1.msra.mxu0 0.0
    %703 = vmatprep.subr.mxu0 0.0
    %704 = vmatpush1.msra.mxu0 0.0
    %705 = vmatprep.subr.mxu0 0.0
    %706 = vmatpush1.msra.mxu0 0.0
    %707 = vmatprep.subr.mxu0 0.0
    %708 = vmatpush1.msra.mxu0 0.0
    %709 = vmatprep.subr.mxu0 0.0
    %710 = vmatpush1.msra.mxu0 0.0
    %711 = vmatprep.subr.mxu0 0.0
    %712 = vmatpush1.msra.mxu0 0.0
    %713 = vmatprep.subr.mxu0 0.0
    %714 = vmatpush1.msra.mxu0 0.0
    %715 = vmatprep.subr.mxu0 0.0
    %716 = vmatpush1.msra.mxu0 0.0
    %717 = vmatprep.subr.mxu0 0.0
    %718 = vmatpush1.msra.mxu0 0.0
    %719 = vmatprep.subr.mxu0 0.0
    %720 = vmatpush1.msra.mxu0 %v298
    %721 = vmatprep.subr.mxu0 0.0
    %722 = vmatpush2.msra.mxu0 0.0
    %723 = vmatprep.subr.mxu0 0.0
    %724 = vmatpush2.msra.mxu0 0.0
    %725 = vmatprep.subr.mxu0 0.0
    %726 = vmatpush2.msra.mxu0 0.0
    %727 = vmatprep.subr.mxu0 0.0
    %728 = vmatpush2.msra.mxu0 0.0
    %729 = vmatprep.subr.mxu0 0.0
    %730 = vmatpush2.msra.mxu0 0.0
    %731 = vmatprep.subr.mxu0 0.0
    %732 = vmatpush2.msra.mxu0 0.0
    %733 = vmatprep.subr.mxu0 0.0
    %734 = vmatpush2.msra.mxu0 0.0
    %735 = vmatprep.subr.mxu0 0.0
    %736 = vmatpush2.msra.mxu0 0.0
    %737 = vmatprep.subr.mxu0 0.0
    %738 = vmatpush2.msra.mxu0 0.0
    %739 = vmatprep.subr.mxu0 0.0
    %740 = vmatpush2.msra.mxu0 0.0
    %741 = vmatprep.subr.mxu0 0.0
    %742 = vmatpush2.msra.mxu0 0.0
    %743 = vmatprep.subr.mxu0 0.0
    %744 = vmatpush2.msra.mxu0 0.0
    %745 = vmatprep.subr.mxu0 0.0
    %746 = vmatpush2.msra.mxu0 0.0
    %747 = vmatprep.subr.mxu0 0.0
    %748 = vmatpush2.msra.mxu0 0.0
    %749 = vmatprep.subr.mxu0 0.0
    %750 = vmatpush2.msra.mxu0 0.0
    %751 = vmatprep.subr.mxu0 0.0
    %752 = vmatpush2.msra.mxu0 0.0
    %753 = vmatprep.mubr.f32.mxu0 0.0
    %754 = vmatmul.mubr.f32.gmra.mxu0 %v687
    %v755 = vpop.f32.mrf.mxu0
    %v756 = vadd.f32 0.0, %v755
    %v757 = vpop.f32.mrf.mxu0
    %758 = vdwg.mxu0
    %v760 = vsel %vm444, %v455, 0
    %762 = vmatprep.subr.mxu0 0.0
    %763 = vmatpush1.msra.mxu0 0.0
    %764 = vmatprep.subr.mxu0 0.0
    %765 = vmatpush1.msra.mxu0 0.0
    %766 = vmatprep.subr.mxu0 0.0
    %767 = vmatpush1.msra.mxu0 0.0
    %768 = vmatprep.subr.mxu0 0.0
    %769 = vmatpush1.msra.mxu0 0.0
    %770 = vmatprep.subr.mxu0 0.0
    %771 = vmatpush1.msra.mxu0 0.0
    %772 = vmatprep.subr.mxu0 0.0
    %773 = vmatpush1.msra.mxu0 0.0
    %774 = vmatprep.subr.mxu0 0.0
    %775 = vmatpush1.msra.mxu0 0.0
    %776 = vmatprep.subr.mxu0 0.0
    %777 = vmatpush1.msra.mxu0 0.0
    %778 = vmatprep.subr.mxu0 0.0
    %779 = vmatpush1.msra.mxu0 0.0
    %780 = vmatprep.subr.mxu0 0.0
    %781 = vmatpush1.msra.mxu0 0.0
    %782 = vmatprep.subr.mxu0 0.0
    %783 = vmatpush1.msra.mxu0 0.0
    %784 = vmatprep.subr.mxu0 0.0
    %785 = vmatpush1.msra.mxu0 0.0
    %786 = vmatprep.subr.mxu0 0.0
    %787 = vmatpush1.msra.mxu0 0.0
    %788 = vmatprep.subr.mxu0 0.0
    %789 = vmatpush1.msra.mxu0 0.0
    %790 = vmatprep.subr.mxu0 0.0
    %791 = vmatpush1.msra.mxu0 0.0
    %792 = vmatprep.subr.mxu0 0.0
    %793 = vmatpush1.msra.mxu0 %v292
    %794 = vmatprep.subr.mxu0 0.0
    %795 = vmatpush2.msra.mxu0 0.0
    %796 = vmatprep.subr.mxu0 0.0
    %797 = vmatpush2.msra.mxu0 0.0
    %798 = vmatprep.subr.mxu0 0.0
    %799 = vmatpush2.msra.mxu0 0.0
    %800 = vmatprep.subr.mxu0 0.0
    %801 = vmatpush2.msra.mxu0 0.0
    %802 = vmatprep.subr.mxu0 0.0
    %803 = vmatpush2.msra.mxu0 0.0
    %804 = vmatprep.subr.mxu0 0.0
    %805 = vmatpush2.msra.mxu0 0.0
    %806 = vmatprep.subr.mxu0 0.0
    %807 = vmatpush2.msra.mxu0 0.0
    %808 = vmatprep.subr.mxu0 0.0
    %809 = vmatpush2.msra.mxu0 0.0
    %810 = vmatprep.subr.mxu0 0.0
    %811 = vmatpush2.msra.mxu0 0.0
    %812 = vmatprep.subr.mxu0 0.0
    %813 = vmatpush2.msra.mxu0 0.0
    %814 = vmatprep.subr.mxu0 0.0
    %815 = vmatpush2.msra.mxu0 0.0
    %816 = vmatprep.subr.mxu0 0.0
    %817 = vmatpush2.msra.mxu0 0.0
    %818 = vmatprep.subr.mxu0 0.0
    %819 = vmatpush2.msra.mxu0 0.0
    %820 = vmatprep.subr.mxu0 0.0
    %821 = vmatpush2.msra.mxu0 0.0
    %822 = vmatprep.subr.mxu0 0.0
    %823 = vmatpush2.msra.mxu0 0.0
    %824 = vmatprep.subr.mxu0 0.0
    %825 = vmatpush2.msra.mxu0 0.0
    %826 = vmatprep.mubr.f32.mxu0 0.0
    %827 = vmatmul.mubr.f32.gmra.mxu0 %v760
    %v828 = vpop.f32.mrf.mxu0
    %v829 = vadd.f32 %v683, %v828
    %v830 = vpop.f32.mrf.mxu0
    %831 = vdwg.mxu0
    %v833 = vsel %vm444, %v456, 0
    %835 = vmatprep.subr.mxu0 0.0
    %836 = vmatpush1.msra.mxu0 0.0
    %837 = vmatprep.subr.mxu0 0.0
    %838 = vmatpush1.msra.mxu0 0.0
    %839 = vmatprep.subr.mxu0 0.0
    %840 = vmatpush1.msra.mxu0 0.0
    %841 = vmatprep.subr.mxu0 0.0
    %842 = vmatpush1.msra.mxu0 0.0
    %843 = vmatprep.subr.mxu0 0.0
    %844 = vmatpush1.msra.mxu0 0.0
    %845 = vmatprep.subr.mxu0 0.0
    %846 = vmatpush1.msra.mxu0 0.0
    %847 = vmatprep.subr.mxu0 0.0
    %848 = vmatpush1.msra.mxu0 0.0
    %849 = vmatprep.subr.mxu0 0.0
    %850 = vmatpush1.msra.mxu0 0.0
    %851 = vmatprep.subr.mxu0 0.0
    %852 = vmatpush1.msra.mxu0 0.0
    %853 = vmatprep.subr.mxu0 0.0
    %854 = vmatpush1.msra.mxu0 0.0
    %855 = vmatprep.subr.mxu0 0.0
    %856 = vmatpush1.msra.mxu0 0.0
    %857 = vmatprep.subr.mxu0 0.0
    %858 = vmatpush1.msra.mxu0 0.0
    %859 = vmatprep.subr.mxu0 0.0
    %860 = vmatpush1.msra.mxu0 0.0
    %861 = vmatprep.subr.mxu0 0.0
    %862 = vmatpush1.msra.mxu0 0.0
    %863 = vmatprep.subr.mxu0 0.0
    %864 = vmatpush1.msra.mxu0 0.0
    %865 = vmatprep.subr.mxu0 0.0
    %866 = vmatpush1.msra.mxu0 %v296
    %867 = vmatprep.subr.mxu0 0.0
    %868 = vmatpush2.msra.mxu0 0.0
    %869 = vmatprep.subr.mxu0 0.0
    %870 = vmatpush2.msra.mxu0 0.0
    %871 = vmatprep.subr.mxu0 0.0
    %872 = vmatpush2.msra.mxu0 0.0
    %873 = vmatprep.subr.mxu0 0.0
    %874 = vmatpush2.msra.mxu0 0.0
    %875 = vmatprep.subr.mxu0 0.0
    %876 = vmatpush2.msra.mxu0 0.0
    %877 = vmatprep.subr.mxu0 0.0
    %878 = vmatpush2.msra.mxu0 0.0
    %879 = vmatprep.subr.mxu0 0.0
    %880 = vmatpush2.msra.mxu0 0.0
    %881 = vmatprep.subr.mxu0 0.0
    %882 = vmatpush2.msra.mxu0 0.0
    %883 = vmatprep.subr.mxu0 0.0
    %884 = vmatpush2.msra.mxu0 0.0
    %885 = vmatprep.subr.mxu0 0.0
    %886 = vmatpush2.msra.mxu0 0.0
    %887 = vmatprep.subr.mxu0 0.0
    %888 = vmatpush2.msra.mxu0 0.0
    %889 = vmatprep.subr.mxu0 0.0
    %890 = vmatpush2.msra.mxu0 0.0
    %891 = vmatprep.subr.mxu0 0.0
    %892 = vmatpush2.msra.mxu0 0.0
    %893 = vmatprep.subr.mxu0 0.0
    %894 = vmatpush2.msra.mxu0 0.0
    %895 = vmatprep.subr.mxu0 0.0
    %896 = vmatpush2.msra.mxu0 0.0
    %897 = vmatprep.subr.mxu0 0.0
    %898 = vmatpush2.msra.mxu0 0.0
    %899 = vmatprep.mubr.f32.mxu0 0.0
    %900 = vmatmul.mubr.f32.gmra.mxu0 %v833
    %v901 = vpop.f32.mrf.mxu0
    %v902 = vadd.f32 %v756, %v901
    %v903 = vpop.f32.mrf.mxu0
    %904 = vdwg.mxu0
    %v905 = vpack.c.bf16 %v902, %v829
    %v906 = vld [vmem:[%s3] sm:$0xf]
    %v907 = vld [vmem:[%s3 + $0x4] sm:$0xf]
    %v908 = vld [vmem:[%s3 + $0x8] sm:$0xf]
    %v909 = vld [vmem:[%s3 + $0xc] sm:$0xf]
    %v910 = vld [vmem:[%s3 + $0x10] sm:$0xf]
    %v911 = vld [vmem:[%s3 + $0x14] sm:$0xf]
    %v912 = vld [vmem:[%s3 + $0x18] sm:$0xf]
    %v913 = vld [vmem:[%s3 + $0x1c] sm:$0xf]
    %v914 = vld [vmem:[%s3 + $0x20] sm:$0xf]
    %v915 = vld [vmem:[%s3 + $0x24] sm:$0xf]
    %v916 = vld [vmem:[%s3 + $0x28] sm:$0xf]
    %v917 = vld [vmem:[%s3 + $0x2c] sm:$0xf]
    %v918 = vld [vmem:[%s3 + $0x30] sm:$0xf]
    %v919 = vld [vmem:[%s3 + $0x34] sm:$0xf]
    %v920 = vld [vmem:[%s3 + $0x38] sm:$0xf]
    %v921 = vld [vmem:[%s3 + $0x3c] sm:$0xf]
    %v922 = vld [vmem:[%s4] sm:$0x1]
    %v924 = vlaneseq
    %v925 = vshrl.u32 %v924, 7
    %v926 = vsub.s32 0, %v925
    %v927 = vrot.slane %v922, %v926
    %v945 = vunpack.c.l.b16 %v906
    %v946 = vunpack.c.l.b16 %v907
    %v947 = vunpack.c.l.b16 %v908
    %v948 = vunpack.c.l.b16 %v909
    %v949 = vunpack.c.l.b16 %v910
    %v950 = vunpack.c.l.b16 %v911
    %v951 = vunpack.c.l.b16 %v912
    %v952 = vunpack.c.l.b16 %v913
    %v953 = vunpack.c.l.b16 %v914
    %v954 = vunpack.c.l.b16 %v915
    %v955 = vunpack.c.l.b16 %v916
    %v956 = vunpack.c.l.b16 %v917
    %v957 = vunpack.c.l.b16 %v918
    %v958 = vunpack.c.l.b16 %v919
    %v959 = vunpack.c.l.b16 %v920
    %v960 = vunpack.c.l.b16 %v921
    %v961 = vpack.c.b16 %v946, %v945
    %v962 = vpack.c.b16 %v948, %v947
    %v963 = vpack.c.b16 %v950, %v949
    %v964 = vpack.c.b16 %v952, %v951
    %v965 = vpack.c.b16 %v954, %v953
    %v966 = vpack.c.b16 %v956, %v955
    %v967 = vpack.c.b16 %v958, %v957
    %v968 = vpack.c.b16 %v960, %v959
    %977 = vmatprep.subr.bf16.mxu0 0
    %978 = vmatpush1.bf16.msra.mxu0 %v968
    %979 = vmatprep.subr.bf16.mxu0 0
    %980 = vmatpush1.bf16.msra.mxu0 %v967
    %981 = vmatprep.subr.bf16.mxu0 0
    %982 = vmatpush1.bf16.msra.mxu0 %v966
    %983 = vmatprep.subr.bf16.mxu0 0
    %984 = vmatpush1.bf16.msra.mxu0 %v965
    %985 = vmatprep.subr.bf16.mxu0 0
    %986 = vmatpush1.bf16.msra.mxu0 %v964
    %987 = vmatprep.subr.bf16.mxu0 0
    %988 = vmatpush1.bf16.msra.mxu0 %v963
    %989 = vmatprep.subr.bf16.mxu0 0
    %990 = vmatpush1.bf16.msra.mxu0 %v962
    %991 = vmatprep.subr.bf16.mxu0 0
    %992 = vmatpush1.bf16.msra.mxu0 %v961
    %993 = vmatprep.subr.bf16.mxu0 0
    %994 = vmatpush2.bf16.msra.mxu0 0
    %995 = vmatprep.subr.bf16.mxu0 0
    %996 = vmatpush2.bf16.msra.mxu0 0
    %997 = vmatprep.subr.bf16.mxu0 0
    %998 = vmatpush2.bf16.msra.mxu0 0
    %999 = vmatprep.subr.bf16.mxu0 0
    %1000 = vmatpush2.bf16.msra.mxu0 0
    %1001 = vmatprep.subr.bf16.mxu0 0
    %1002 = vmatpush2.bf16.msra.mxu0 0
    %1003 = vmatprep.subr.bf16.mxu0 0
    %1004 = vmatpush2.bf16.msra.mxu0 0
    %1005 = vmatprep.subr.bf16.mxu0 0
    %1006 = vmatpush2.bf16.msra.mxu0 0
    %1007 = vmatprep.subr.bf16.mxu0 0
    %1008 = vmatpush2.bf16.msra.mxu0 0
    %1009 = vmatprep.mubr.bf16.mxu0 0
    %1010 = vmatmul.mubr.bf16.gmra.mxu0 %v905
    %v1011 = vpop.f32.mrf.mxu0
    %v1012 = vadd.f32 %v927, %v1011
    %v1013 = vpop.f32.mrf.mxu0
    %v1014 = vpop.f32.mrf.mxu0
    %v1015 = vadd.f32 %v927, %v1014
    %v1016 = vpop.f32.mrf.mxu0
    %1017 = vdwg.mxu0
    %v1018 = vtanh.pop %v1012
    %v1019 = vtanh.pop %v1015
    %v1020 = vpack.c.bf16 %v1019, %v1018
    %v1021 = vld [vmem:[%s5] sm:$0xf]
    %v1022 = vld [vmem:[%s5 + $0x4] sm:$0xf]
    %v1023 = vld [vmem:[%s5 + $0x8] sm:$0xf]
    %v1024 = vld [vmem:[%s5 + $0xc] sm:$0xf]
    %v1025 = vld [vmem:[%s5 + $0x10] sm:$0xf]
    %v1026 = vld [vmem:[%s5 + $0x14] sm:$0xf]
    %v1027 = vld [vmem:[%s5 + $0x18] sm:$0xf]
    %v1028 = vld [vmem:[%s5 + $0x1c] sm:$0xf]
    %v1029 = vld [vmem:[%s5 + $0x20] sm:$0xf]
    %v1030 = vld [vmem:[%s5 + $0x24] sm:$0xf]
    %v1031 = vld [vmem:[%s5 + $0x28] sm:$0xf]
    %v1032 = vld [vmem:[%s5 + $0x2c] sm:$0xf]
    %v1033 = vld [vmem:[%s5 + $0x30] sm:$0xf]
    %v1034 = vld [vmem:[%s5 + $0x34] sm:$0xf]
    %v1035 = vld [vmem:[%s5 + $0x38] sm:$0xf]
    %v1036 = vld [vmem:[%s5 + $0x3c] sm:$0xf]
    %v1037 = vld [vmem:[#allocation2] sm:$0x1]
    %v1039 = vlaneseq
    %v1040 = vshrl.u32 %v1039, 7
    %v1041 = vsub.s32 0, %v1040
    %v1042 = vrot.slane %v1037, %v1041
    %v1060 = vunpack.c.l.b16 %v1021
    %v1061 = vunpack.c.l.b16 %v1022
    %v1062 = vunpack.c.l.b16 %v1023
    %v1063 = vunpack.c.l.b16 %v1024
    %v1064 = vunpack.c.l.b16 %v1025
    %v1065 = vunpack.c.l.b16 %v1026
    %v1066 = vunpack.c.l.b16 %v1027
    %v1067 = vunpack.c.l.b16 %v1028
    %v1068 = vunpack.c.l.b16 %v1029
    %v1069 = vunpack.c.l.b16 %v1030
    %v1070 = vunpack.c.l.b16 %v1031
    %v1071 = vunpack.c.l.b16 %v1032
    %v1072 = vunpack.c.l.b16 %v1033
    %v1073 = vunpack.c.l.b16 %v1034
    %v1074 = vunpack.c.l.b16 %v1035
    %v1075 = vunpack.c.l.b16 %v1036
    %v1076 = vpack.c.b16 %v1061, %v1060
    %v1077 = vpack.c.b16 %v1063, %v1062
    %v1078 = vpack.c.b16 %v1065, %v1064
    %v1079 = vpack.c.b16 %v1067, %v1066
    %v1080 = vpack.c.b16 %v1069, %v1068
    %v1081 = vpack.c.b16 %v1071, %v1070
    %v1082 = vpack.c.b16 %v1073, %v1072
    %v1083 = vpack.c.b16 %v1075, %v1074
    %1092 = vmatprep.subr.bf16.mxu0 0
    %1093 = vmatpush1.bf16.msra.mxu0 %v1083
    %1094 = vmatprep.subr.bf16.mxu0 0
    %1095 = vmatpush1.bf16.msra.mxu0 %v1082
    %1096 = vmatprep.subr.bf16.mxu0 0
    %1097 = vmatpush1.bf16.msra.mxu0 %v1081
    %1098 = vmatprep.subr.bf16.mxu0 0
    %1099 = vmatpush1.bf16.msra.mxu0 %v1080
    %1100 = vmatprep.subr.bf16.mxu0 0
    %1101 = vmatpush1.bf16.msra.mxu0 %v1079
    %1102 = vmatprep.subr.bf16.mxu0 0
    %1103 = vmatpush1.bf16.msra.mxu0 %v1078
    %1104 = vmatprep.subr.bf16.mxu0 0
    %1105 = vmatpush1.bf16.msra.mxu0 %v1077
    %1106 = vmatprep.subr.bf16.mxu0 0
    %1107 = vmatpush1.bf16.msra.mxu0 %v1076
    %1108 = vmatprep.subr.bf16.mxu0 0
    %1109 = vmatpush2.bf16.msra.mxu0 0
    %1110 = vmatprep.subr.bf16.mxu0 0
    %1111 = vmatpush2.bf16.msra.mxu0 0
    %1112 = vmatprep.subr.bf16.mxu0 0
    %1113 = vmatpush2.bf16.msra.mxu0 0
    %1114 = vmatprep.subr.bf16.mxu0 0
    %1115 = vmatpush2.bf16.msra.mxu0 0
    %1116 = vmatprep.subr.bf16.mxu0 0
    %1117 = vmatpush2.bf16.msra.mxu0 0
    %1118 = vmatprep.subr.bf16.mxu0 0
    %1119 = vmatpush2.bf16.msra.mxu0 0
    %1120 = vmatprep.subr.bf16.mxu0 0
    %1121 = vmatpush2.bf16.msra.mxu0 0
    %1122 = vmatprep.subr.bf16.mxu0 0
    %1123 = vmatpush2.bf16.msra.mxu0 0
    %1124 = vmatprep.mubr.bf16.mxu0 0
    %1125 = vmatmul.mubr.bf16.gmra.mxu0 %v1020
    %v1126 = vpop.f32.mrf.mxu0
    %v1127 = vadd.f32 %v1042, %v1126
    %v1128 = vpop.f32.mrf.mxu0
    %v1129 = vpop.f32.mrf.mxu0
    %v1130 = vadd.f32 %v1042, %v1129
    %v1131 = vpop.f32.mrf.mxu0
    %1132 = vdwg.mxu0
    %v1133 = vmul.f32 %v1127, 1.442695
    %v1134 = vpow.pop %v1133
    %v1135 = vmul.f32 %v1130, 1.442695
    %v1136 = vpow.pop %v1135
    %vm1137 = vcmask 7168
    %v1138 = vsel %vm1137, %v1134, 0.0
    %v1139 = vrot.slane %v1138, 4
    %v1140 = vadd.f32 %v1138, %v1139
    %v1141 = vrot.slane %v1140, 2
    %v1142 = vadd.f32 %v1140, %v1141
    %v1143 = vrot.slane %v1142, 1
    %v1144 = vadd.f32 %v1142, %v1143
    %v1145 = vsel %vm1137, %v1136, 0.0
    %v1146 = vrot.slane %v1145, 4
    %v1147 = vadd.f32 %v1145, %v1146
    %v1148 = vrot.slane %v1147, 2
    %v1149 = vadd.f32 %v1147, %v1148
    %v1150 = vrot.slane %v1149, 1
    %v1151 = vadd.f32 %v1149, %v1150
    %v1152 = vadd.f32 %v1144, 1e-08
    %v1153 = vadd.f32 %v1151, 1e-08
    %v1154 = vrcp.pop %v1152
    %v1155 = vrcp.pop %v1153
    %v1156 = vmul.f32 %v1134, %v1154
    %v1157 = vmul.f32 %v1136, %v1155
    %1159 = vset.pattern.permute.xlu0 0
    %1160 = vperm.xlu0 %1159, %v1156
    %v1161 = vpop.permute.xlu0 %1160
    %1164 = vset.pattern.permute.xlu0 0
    %1165 = vperm.xlu0 %1164, %v1157
    %v1166 = vpop.permute.xlu0 %1165
    %v1168 = vmul.f32 %v829, %v1161
    %v1169 = vmul.f32 %v902, %v1166
    %v1170 = vrot.slane %v1168, 4
    %v1171 = vadd.f32 %v1168, %v1170
    %v1172 = vrot.slane %v1171, 2
    %v1173 = vadd.f32 %v1171, %v1172
    %v1174 = vrot.slane %v1173, 1
    %v1175 = vadd.f32 %v1173, %v1174
    %v1176 = vrot.slane %v1169, 4
    %v1177 = vadd.f32 %v1169, %v1176
    %v1178 = vrot.slane %v1177, 2
    %v1179 = vadd.f32 %v1177, %v1178
    %v1180 = vrot.slane %v1179, 1
    %v1181 = vadd.f32 %v1179, %v1180
    %vm1184 = vcmask 1041409
    %v1185 = vsel %vm1184, %v1181, %v1175
    %1187 = vst [vmem:[#allocation8] sm:$0x3] %v1185
    // Predicated region
    $region38: #{tpu_custom_call.1} parent=1 // pred_check
      _
    $region39: #{tpu_custom_call.1} parent=1 // pred_check_branch
      %1189 = sbr.rel (0) target = $region41
    $region40: #{tpu_custom_call.1} parent=1 // pred_region
      %s1191 = ssub.s32 32, 32
      %1192 = vsyncadd [#allocation5], %s1191
      %s1194 = sshll.u32 [#allocation8], 4
      %s1195 = int_to_ptr.vmem [resolvable:$true] %s1194
      %1197 = dma.vmem_to_hbm [thread:$0]  %s1195, 32, %s7, [#allocation5]
    $region41: #{tpu_custom_call.1} parent=1 // pred_fallthru
      _
    // Predicated region
    $region42: #{tpu_custom_call.1} parent=1 // pred_check
      _
    $region43: #{tpu_custom_call.1} parent=1 // pred_check_branch
      %1199 = sbr.rel (0) target = $region45
    $region44: #{tpu_custom_call.1} parent=1 // pred_region
      %1200 = dma.done [#allocation5], 32
    $region45: #{tpu_custom_call.1} parent=1 // pred_fallthru
      _
    %1201 = vsyncpa [#allocation4], 1
    %1202 = vsyncpa [#allocation7], 1
    %1203 = vsyncpa [#allocation5], 1

</llo_original>
